<compile_context>
chip_gen: v6e
topology: v6e:2x2x1
jax: 0.10.0
libtpu: 0.0.40
codegen_flags: <defaults>
</compile_context>

<pallas_src>
import jax
import jax.numpy as jnp
from jax.experimental import pallas as pl
from jax.experimental.pallas import tpu as pltpu


def _wide_kernel(x_ref, p_ref, b_ref, o_ref):
    # x_ref: (tb, Dk) VMEM (streamed); p_ref: (Dk, G) VMEM (resident)
    # b_ref: (1, 1) SMEM scalar;       o_ref: (tb, G) VMEM
    acc = jnp.dot(x_ref[...], p_ref[...], preferred_element_type=jnp.float32)
    o_ref[...] = (acc + b_ref[0, 0]).astype(o_ref.dtype)


def _pick_block_rows(n_rows, row_bytes, target_bytes, block_rows):
    """Rows per x tile: as large as the byte budget allows (no hard row cap)."""
    if block_rows is None:
        block_rows = max(8, target_bytes // max(1, row_bytes))
    if block_rows >= n_rows:
        return n_rows                        # single full block (any size OK)
    return max(8, (block_rows // 8) * 8)     # keep a sublane multiple


def wide_forward(x, weight, bias, *, block_rows=None,
                 target_bytes=8 * 1024 * 1024,
                 vmem_limit_bytes=32 * 1024 * 1024,
                 core_parallel=False):
    """Forward of `Wide`: x @ weight.T + bias.

    x: (B, D); weight: (1, D) (PyTorch Linear layout); bias: (1,).
    Returns (B, 1) in x.dtype.
    """
    B, D = x.shape

    # ---- host-side layout prep (free reshapes; tiny weight transforms) -----
    G = 128 // D if (D < 128 and 128 % D == 0) else 1
    pad = (-B) % G
    if pad:
        # TODO(synk): padding adds one extra HBM copy of x; only triggers when
        # B is not a multiple of 128 // D (rare for power-of-two batches).
        x = jnp.pad(x, ((0, pad), (0, 0)))
    Bp = B + pad
    Bk, Dk = Bp // G, G * D
    xk = x.reshape(Bk, Dk)                        # contiguous reshape: no copy

    w = weight.reshape(1, D).astype(x.dtype)
    # P[g*D + d, g] = w[d]  =>  (xk @ P)[r, g] = sum_d x[r*G + g, d] * w[d]
    proj = jnp.kron(jnp.eye(G, dtype=x.dtype), w.reshape(D, 1))     # (Dk, G)
    b = jnp.asarray(bias, jnp.float32).reshape(1, 1)

    tb = _pick_block_rows(Bk, Dk * x.dtype.itemsize, target_bytes, block_rows)
    grid = (pl.cdiv(Bk, tb),)

    itemsize = x.dtype.itemsize
    cost = pl.CostEstimate(
        flops=2 * Bk * Dk * G,
        transcendentals=0,
        bytes_accessed=Bk * Dk * itemsize + Bk * G * itemsize + Dk * G * itemsize,
    )

    out = pl.pallas_call(
        _wide_kernel,
        out_shape=jax.ShapeDtypeStruct((Bk, G), x.dtype),
        grid_spec=pltpu.PrefetchScalarGridSpec(
            num_scalar_prefetch=0,
            grid=grid,
            in_specs=[
                pl.BlockSpec((tb, Dk), lambda i: (i, 0)),            # streamed x
                pl.BlockSpec((Dk, G), lambda i: (0, 0)),             # resident proj
                pl.BlockSpec(memory_space=pltpu.MemorySpace.SMEM),   # scalar bias
            ],
            out_specs=pl.BlockSpec((tb, G), lambda i: (i, 0)),
        ),
        compiler_params=pltpu.CompilerParams(
            dimension_semantics=(
                (pltpu.CORE_PARALLEL,) if core_parallel else ("parallel",)
            ),
            vmem_limit_bytes=vmem_limit_bytes,
        ),
        cost_estimate=cost,
    )(xk, proj, b)

    out = out.reshape(Bp, 1)        # row-major flatten restores batch order
    return out[:B] if pad else out


def init_wide_params(key, dense_fea_num, gain=0.01):
    """Xavier-normal init (matches nn.init.xavier_normal_, gain=0.01); bias zeros."""
    fan_in, fan_out = dense_fea_num, 1
    std = gain * jnp.sqrt(2.0 / (fan_in + fan_out))
    k_w, _ = jax.random.split(key)
    weight = std * jax.random.normal(k_w, (1, dense_fea_num), dtype=jnp.float32)
    bias = jnp.zeros((1,), dtype=jnp.float32)
    return weight, bias


if __name__ == "__main__":
    key = jax.random.PRNGKey(0)
    k_x, k_p, k_x2, k_x3 = jax.random.split(key, 4)

    # Case 1: D=32 -> lane-folded path (G=4), single full-batch tile.
    B, D = 8, 32
    x = jax.random.normal(k_x, (B, D), dtype=jnp.float32)
    weight, bias = init_wide_params(k_p, D)
    out = jax.block_until_ready(wide_forward(x, weight, bias))
    ref = x @ weight.T + bias
    assert out.shape == (B, 1)
    assert jnp.allclose(out, ref, atol=1e-5, rtol=1e-5)

    # Case 2: D=32, B=72 -> folded rows Bk=18, tiles of 8 reshaped rows
    # (grid of 3 incl. a partial last tile), nonzero bias.
    B2 = 72
    x2 = jax.random.normal(k_x2, (B2, D), dtype=jnp.float32)
    bias2 = jnp.full((1,), 0.37, dtype=jnp.float32)
    out2 = jax.block_until_ready(wide_forward(x2, weight, bias2, block_rows=8))
    ref2 = x2 @ weight.T + bias2
    assert out2.shape == (B2, 1)
    assert jnp.allclose(out2, ref2, atol=1e-5, rtol=1e-5)

    # Case 3: D=48 (does not divide 128) -> general G=1 fallback, tiled grid.
    B3, D3 = 40, 48
    x3 = jax.random.normal(k_x3, (B3, D3), dtype=jnp.float32)
    w3, b3 = init_wide_params(k_p, D3)
    out3 = jax.block_until_ready(wide_forward(x3, w3, b3, block_rows=16))
    ref3 = x3 @ w3.T + b3
    assert out3.shape == (B3, 1)
    assert jnp.allclose(out3, ref3, atol=1e-5, rtol=1e-5)

    print("KERNEL_OK")
</pallas_src>

<mosaic_0001>
module attributes {stable_mosaic.version = 11 : i64} {
  func.func @_wide_kernel(%arg0: i32, %arg1: memref<2x128xf32, #tpu.memory_space<vmem>>, %arg2: memref<128x4xf32, #tpu.memory_space<vmem>>, %arg3: memref<1x1xf32, #tpu.memory_space<smem>>, %arg4: memref<2x4xf32, #tpu.memory_space<vmem>>) attributes {dimension_semantics = [#tpu.dimension_semantics<parallel>], iteration_bounds = array<i64: 1>, scalar_prefetch = 0 : i64, scratch_operands = 0 : i64, tpu.core_type = #tpu.core_type<tc>, window_params = [{transform_indices = @transform_0, window_bounds = array<i64: 2, 128>}, {pipeline_mode = #tpu.pipeline_mode<synchronous>, transform_indices = @transform_1, window_bounds = array<i64: 128, 4>}, {transform_indices = @transform_2, window_bounds = array<i64: 1, 1>}, {transform_indices = @transform_3, window_bounds = array<i64: 2, 4>}]} {
    %c0 = arith.constant 0 : index
    %c0_0 = arith.constant 0 : index
    %0 = vector.load %arg1[%c0, %c0_0] : memref<2x128xf32, #tpu.memory_space<vmem>>, vector<2x128xf32>
    %c0_1 = arith.constant 0 : index
    %c0_2 = arith.constant 0 : index
    %1 = vector.load %arg2[%c0_1, %c0_2] : memref<128x4xf32, #tpu.memory_space<vmem>>, vector<128x4xf32>
    %cst = arith.constant dense<0.000000e+00> : vector<2x4xf32>
    %2 = tpu.matmul %0, %1, %cst {dimension_numbers = #tpu.dot_dimension_numbers<[1], [0], [0], [1], [0, 0, 1, 1], [], []>} : vector<2x128xf32>, vector<128x4xf32>, vector<2x4xf32> -> vector<2x4xf32>
    %c0_3 = arith.constant 0 : index
    %c0_4 = arith.constant 0 : index
    %3 = memref.load %arg3[%c0_3, %c0_4] : memref<1x1xf32, #tpu.memory_space<smem>>
    %4 = vector.broadcast %3 : f32 to vector<2x4xf32>
    %5 = arith.addf %2, %4 : vector<2x4xf32>
    %c0_5 = arith.constant 0 : index
    %c0_6 = arith.constant 0 : index
    %6 = vector.load %arg4[%c0_5, %c0_6] : memref<2x4xf32, #tpu.memory_space<vmem>>, vector<2x4xf32>
    tpu.vector_store %arg4[%c0_5, %c0_6], %5 {strides = array<i32>} : memref<2x4xf32, #tpu.memory_space<vmem>>, vector<2x4xf32>,
    return
  }
  func.func @transform_0(%arg0: i32) -> (i32, i32) {
    %c0_i32 = arith.constant 0 : i32
    %c0_i32_0 = arith.constant 0 : i32
    return %arg0, %c0_i32 : i32, i32
  }
  func.func @transform_1(%arg0: i32) -> (i32, i32) {
    %c0_i32 = arith.constant 0 : i32
    %c0_i32_0 = arith.constant 0 : i32
    %c0_i32_1 = arith.constant 0 : i32
    return %c0_i32, %c0_i32_0 : i32, i32
  }
  func.func @transform_2(%arg0: i32) -> (i32, i32) {
    %c0_i32 = arith.constant 0 : i32
    %c0_i32_0 = arith.constant 0 : i32
    %c0_i32_1 = arith.constant 0 : i32
    return %c0_i32, %c0_i32_0 : i32, i32
  }
  func.func @transform_3(%arg0: i32) -> (i32, i32) {
    %c0_i32 = arith.constant 0 : i32
    %c0_i32_0 = arith.constant 0 : i32
    return %arg0, %c0_i32 : i32, i32
  }
}

</mosaic_0001>

<llo_original>
// kernel: tpu_custom_call.1
$region0: #{tpu_custom_call.1}
  #allocation0 [shape = 'u32[]', space=smem, size = 0x4, offset = 0x4, fixed_abs, tag = 'smem constant byte address 0x4 - core index']
  #allocation1 [shape = 'u32[144,128]{1,0:T(1,128)}', space=vmem, size = 0x12000, scoped, tag = 'internal scratch']
  #allocation2 [shape = 'f32[1,1]{1,0:T(1,128)S(6)}', space=smem, size = 0x200, scoped, tag = 'scoped memory for tpu_custom_call.1']
  %s0 = inlined_call_operand.vmem [shape: f32[2,128], index: 0, kind: input, shape index: {}]
  %s1 = inlined_call_operand.vmem [shape: f32[128,4], index: 1, kind: input, shape index: {}]
  %s2 = inlined_call_operand.<no memory space> [shape: f32[1,1], index: 2, kind: input, shape index: {}]
  %s3 = inlined_call_operand.hbm [shape: f32[2,4], index: 3, kind: output, shape index: {}]
  %s4 = sld [smem:[#allocation0]]
  $region22: #{tpu_custom_call.1} parent=0
    _
  %s6 = ssub.s32 1, %s4
  %s7 = scalar_select 0, %s6, %s4
  %8 = sst [smem:[#allocation2]] %s2
  $region1: #{tpu_custom_call.1} parent=0
    #allocation3 [shape = 'u8[1024]{0}', space=vmem, size = 0x400, scoped, tag = 'output window, operand 0, single buffered']
    #allocation4 [shape = 's32[1]{0}', space=sflag, size = 0x4, scoped, tag = 'scoped memory for tpu_custom_call.1']
    %9 = vsyncpa [#allocation4], 0
    // Predicated region
    $region2: #{tpu_custom_call.1} parent=1 // pred_check
      _
    $region3: #{tpu_custom_call.1} parent=1 // pred_check_branch
      %11 = sbr.rel (0) target = $region5
    $region4: #{tpu_custom_call.1} parent=1 // pred_region
      _
    $region5: #{tpu_custom_call.1} parent=1 // pred_fallthru
      _
    // Predicated region
    $region6: #{tpu_custom_call.1} parent=1 // pred_check
      _
    $region7: #{tpu_custom_call.1} parent=1 // pred_check_branch
      %13 = sbr.rel (0) target = $region9
    $region8: #{tpu_custom_call.1} parent=1 // pred_region
      _
    $region9: #{tpu_custom_call.1} parent=1 // pred_fallthru
      _
    // Predicated region
    $region10: #{tpu_custom_call.1} parent=1 // pred_check
      _
    $region11: #{tpu_custom_call.1} parent=1 // pred_check_branch
      %15 = sbr.rel (0) target = $region13
    $region12: #{tpu_custom_call.1} parent=1 // pred_region
      _
    $region13: #{tpu_custom_call.1} parent=1 // pred_fallthru
      _
    %v16 = vld [vmem:[%s0] sm:$0x3]
    %v17 = vld [vmem:[%s1] sm:$0xff]
    %v18 = vld [vmem:[%s1 + $0x8] sm:$0xff]
    %v19 = vld [vmem:[%s1 + $0x10] sm:$0xff]
    %v20 = vld [vmem:[%s1 + $0x18] sm:$0xff]
    %v21 = vld [vmem:[%s1 + $0x20] sm:$0xff]
    %v22 = vld [vmem:[%s1 + $0x28] sm:$0xff]
    %v23 = vld [vmem:[%s1 + $0x30] sm:$0xff]
    %v24 = vld [vmem:[%s1 + $0x38] sm:$0xff]
    %v25 = vld [vmem:[%s1 + $0x40] sm:$0xff]
    %v26 = vld [vmem:[%s1 + $0x48] sm:$0xff]
    %v27 = vld [vmem:[%s1 + $0x50] sm:$0xff]
    %v28 = vld [vmem:[%s1 + $0x58] sm:$0xff]
    %v29 = vld [vmem:[%s1 + $0x60] sm:$0xff]
    %v30 = vld [vmem:[%s1 + $0x68] sm:$0xff]
    %v31 = vld [vmem:[%s1 + $0x70] sm:$0xff]
    %v32 = vld [vmem:[%s1 + $0x78] sm:$0xff]
    %s33 = sld [smem:[#allocation2]]
    %v34 = vstv %s33
    %35 = vmatprep.subr.mxu0 0.0
    %36 = vmatpush1.msra.mxu0 %v32
    %37 = vmatprep.subr.mxu0 0.0
    %38 = vmatpush1.msra.mxu0 %v31
    %39 = vmatprep.subr.mxu0 0.0
    %40 = vmatpush1.msra.mxu0 %v30
    %41 = vmatprep.subr.mxu0 0.0
    %42 = vmatpush1.msra.mxu0 %v29
    %43 = vmatprep.subr.mxu0 0.0
    %44 = vmatpush1.msra.mxu0 %v28
    %45 = vmatprep.subr.mxu0 0.0
    %46 = vmatpush1.msra.mxu0 %v27
    %47 = vmatprep.subr.mxu0 0.0
    %48 = vmatpush1.msra.mxu0 %v26
    %49 = vmatprep.subr.mxu0 0.0
    %50 = vmatpush1.msra.mxu0 %v25
    %51 = vmatprep.subr.mxu0 0.0
    %52 = vmatpush1.msra.mxu0 %v24
    %53 = vmatprep.subr.mxu0 0.0
    %54 = vmatpush1.msra.mxu0 %v23
    %55 = vmatprep.subr.mxu0 0.0
    %56 = vmatpush1.msra.mxu0 %v22
    %57 = vmatprep.subr.mxu0 0.0
    %58 = vmatpush1.msra.mxu0 %v21
    %59 = vmatprep.subr.mxu0 0.0
    %60 = vmatpush1.msra.mxu0 %v20
    %61 = vmatprep.subr.mxu0 0.0
    %62 = vmatpush1.msra.mxu0 %v19
    %63 = vmatprep.subr.mxu0 0.0
    %64 = vmatpush1.msra.mxu0 %v18
    %65 = vmatprep.subr.mxu0 0.0
    %66 = vmatpush1.msra.mxu0 %v17
    %67 = vmatprep.subr.mxu0 0.0
    %68 = vmatpush2.msra.mxu0 0.0
    %69 = vmatprep.subr.mxu0 0.0
    %70 = vmatpush2.msra.mxu0 0.0
    %71 = vmatprep.subr.mxu0 0.0
    %72 = vmatpush2.msra.mxu0 0.0
    %73 = vmatprep.subr.mxu0 0.0
    %74 = vmatpush2.msra.mxu0 0.0
    %75 = vmatprep.subr.mxu0 0.0
    %76 = vmatpush2.msra.mxu0 0.0
    %77 = vmatprep.subr.mxu0 0.0
    %78 = vmatpush2.msra.mxu0 0.0
    %79 = vmatprep.subr.mxu0 0.0
    %80 = vmatpush2.msra.mxu0 0.0
    %81 = vmatprep.subr.mxu0 0.0
    %82 = vmatpush2.msra.mxu0 0.0
    %83 = vmatprep.subr.mxu0 0.0
    %84 = vmatpush2.msra.mxu0 0.0
    %85 = vmatprep.subr.mxu0 0.0
    %86 = vmatpush2.msra.mxu0 0.0
    %87 = vmatprep.subr.mxu0 0.0
    %88 = vmatpush2.msra.mxu0 0.0
    %89 = vmatprep.subr.mxu0 0.0
    %90 = vmatpush2.msra.mxu0 0.0
    %91 = vmatprep.subr.mxu0 0.0
    %92 = vmatpush2.msra.mxu0 0.0
    %93 = vmatprep.subr.mxu0 0.0
    %94 = vmatpush2.msra.mxu0 0.0
    %95 = vmatprep.subr.mxu0 0.0
    %96 = vmatpush2.msra.mxu0 0.0
    %97 = vmatprep.subr.mxu0 0.0
    %98 = vmatpush2.msra.mxu0 0.0
    %99 = vmatprep.mubr.f32.mxu0 0.0
    %100 = vmatmul.mubr.f32.gmra.mxu0 %v16
    %v101 = vpop.f32.mrf.mxu0
    %v102 = vadd.f32 %v34, %v101
    %v103 = vpop.f32.mrf.mxu0
    %104 = vdwg.mxu0
    %vm105 = vcmask 25600
    %106 = vst.msk [vmem:[#allocation3] sm:$0x3] %vm105, %v102
    // Predicated region
    $region14: #{tpu_custom_call.1} parent=1 // pred_check
      _
    $region15: #{tpu_custom_call.1} parent=1 // pred_check_branch
      %108 = sbr.rel (0) target = $region17
    $region16: #{tpu_custom_call.1} parent=1 // pred_region
      %s110 = ssub.s32 32, 32
      %111 = vsyncadd [#allocation4], %s110
      %s113 = sshll.u32 [#allocation3], 4
      %s114 = int_to_ptr.vmem [resolvable:$true] %s113
      %116 = dma.vmem_to_hbm [thread:$0]  %s114, 32, %s3, [#allocation4]
    $region17: #{tpu_custom_call.1} parent=1 // pred_fallthru
      _
    // Predicated region
    $region18: #{tpu_custom_call.1} parent=1 // pred_check
      _
    $region19: #{tpu_custom_call.1} parent=1 // pred_check_branch
      %118 = sbr.rel (0) target = $region21
    $region20: #{tpu_custom_call.1} parent=1 // pred_region
      %119 = dma.done [#allocation4], 32
    $region21: #{tpu_custom_call.1} parent=1 // pred_fallthru
      _
    %120 = vsyncpa [#allocation4], 1

</llo_original>
